<compile_context>
chip_gen: v6e
topology: v6e:2x2x1
jax: 0.10.0
libtpu: 0.0.40
codegen_flags: <defaults>
</compile_context>

<pallas_src>
import jax
import jax.numpy as jnp
from jax.experimental import pallas as pl
from jax.experimental.pallas import tpu as pltpu


def _round_up(n, m):
    return (n + m - 1) // m * m


def _tile_vmem_bytes(tb, kp, tn, wsz):
    """Approximate double-buffered VMEM footprint of one grid step."""
    return (2 * kp * tn * wsz        # W2 tile (streamed, double-buffered)
            + 2 * tn * 4             # b2 tile
            + 2 * 2 * kp * 4         # W1, b1 (resident, counted conservatively)
            + 2 * tb * 128 * 4       # x tile (lane-padded)
            + 2 * tb * tn * 4)       # out tile


def _cond_processor_kernel(x_ref, w1_ref, b1_ref, w2_ref, b2_ref, o_ref):
    # Layer 1: K=1 contraction == outer product -> plain VPU broadcast mul/add.
    # Recomputed every grid step (cheap; W2 streaming / MXU dominates).
    x = x_ref[...]                                        # (TB, 1) f32
    h = x * w1_ref[...] + b1_ref[...]                     # (TB, Kp) f32
    # gelu_new (GPT-2 tanh approximation) in f32.
    c = jnp.float32(0.7978845608028654)                   # sqrt(2/pi)
    h = 0.5 * h * (1.0 + jnp.tanh(c * (h + 0.044715 * (h * h * h))))
    # Layer 2 (this N tile): (TB, Kp) @ (Kp, TN) on the MXU, f32 accumulation.
    # h is cast to the W2 dtype only here (bf16 MXU path when W2 is bf16).
    y = jnp.dot(h.astype(w2_ref.dtype), w2_ref[...],
                preferred_element_type=jnp.float32)
    o_ref[...] = (y + b2_ref[...]).astype(o_ref.dtype)


def prepare_condition_processor_params(w_fc, b_fc, w_proj, b_proj, embed_dim, *,
                                        weight_dtype=jnp.bfloat16, n_block=512):
    """One-time (init-time) padding + casting of the weights.

    Do NOT call this per forward step: it reads/writes all of W2 in HBM.
    """
    E = embed_dim
    inner_dim = 2 * E
    out_dim = 5 * E + 1
    assert w_fc.shape == (1, inner_dim) and b_fc.shape == (1, inner_dim)
    assert w_proj.shape == (inner_dim, out_dim) and b_proj.shape == (1, out_dim)

    wsz = jnp.dtype(weight_dtype).itemsize

    # MXU-aligned contraction depth.
    Kp = _round_up(inner_dim, 128)

    # N tile: large and lane-aligned; pad Np UP to a multiple of TN (do not shrink
    # TN to divide the raw out_dim).  Shrink TN only if the tile footprint would
    # not fit in the 48 MiB VMEM budget (worst-case TB = 256).
    TN = max(128, min(n_block, _round_up(out_dim, 128)))
    TN = _round_up(TN, 128)
    while TN > 128 and _tile_vmem_bytes(256, Kp, TN, wsz) > 48 * 1024 * 1024:
        TN -= 128
    Np = _round_up(out_dim, TN)

    # Zero-padded operands (padding contributes exactly 0 to the real outputs).
    w1_p = jnp.zeros((1, Kp), jnp.float32).at[:, :inner_dim].set(w_fc.astype(jnp.float32))
    b1_p = jnp.zeros((1, Kp), jnp.float32).at[:, :inner_dim].set(b_fc.astype(jnp.float32))
    w2_p = jnp.zeros((Kp, Np), weight_dtype).at[:inner_dim, :out_dim].set(
        w_proj.astype(weight_dtype))
    b2_p = jnp.zeros((1, Np), jnp.float32).at[:, :out_dim].set(b_proj.astype(jnp.float32))

    return {
        "w1_p": w1_p, "b1_p": b1_p, "w2_p": w2_p, "b2_p": b2_p,
        "embed_dim": E, "inner_dim": inner_dim, "out_dim": out_dim,
        "Kp": Kp, "Np": Np, "TN": TN,
        "weight_dtype": jnp.dtype(weight_dtype),
    }


def condition_processor_forward(condition_values, params, *, batch_block=None):
    """condition_values: (B, 1) float32.  Returns the 6-way split like the torch module."""
    B = condition_values.shape[0]
    assert condition_values.shape == (B, 1)

    E = params["embed_dim"]
    out_dim = params["out_dim"]
    Kp, Np, TN = params["Kp"], params["Np"], params["TN"]
    wsz = params["weight_dtype"].itemsize

    # Batch tile: 256 fills the v6e/v7x 256-row MXU when the batch is large enough,
    # 128 otherwise (also optimal on v5e's 128-wide MXU).
    if batch_block is None:
        batch_block = 256 if B >= 256 else 128
    TB = min(batch_block, _round_up(B, 8))
    B_pad = _round_up(B, TB)

    # Only the tiny activation is padded per call.
    x_p = jnp.zeros((B_pad, 1), jnp.float32).at[:B, :].set(
        condition_values.astype(jnp.float32))

    # Scoped-VMEM budget from the actual tile footprint, capped at 48 MiB
    # (headroom under v7x's 64 MiB physical VMEM per TensorCore).
    needed = _tile_vmem_bytes(TB, Kp, TN, wsz)
    vmem_limit = min(max(32 * 1024 * 1024, int(1.25 * needed)), 48 * 1024 * 1024)

    n_tiles = Np // TN
    b_tiles = B_pad // TB
    grid = (n_tiles, b_tiles)   # N outer (W2 tile resident across batch), batch inner.

    cost = pl.CostEstimate(
        flops=2 * B_pad * Kp * Np,
        transcendentals=B_pad * Kp * n_tiles,          # tanh recomputed per N tile
        bytes_accessed=(Kp * Np * wsz                   # W2 streamed once
                        + B_pad * Np * 4                # output
                        + B_pad * 4 + Np * 4 + 2 * Kp * 4),
    )

    out = pl.pallas_call(
        _cond_processor_kernel,
        out_shape=jax.ShapeDtypeStruct((B_pad, Np), jnp.float32),
        grid_spec=pltpu.PrefetchScalarGridSpec(
            num_scalar_prefetch=0,
            grid=grid,
            in_specs=[
                pl.BlockSpec((TB, 1), lambda j, i: (i, 0)),    # x (per batch block)
                pl.BlockSpec((1, Kp), lambda j, i: (0, 0)),    # W1 (resident)
                pl.BlockSpec((1, Kp), lambda j, i: (0, 0)),    # b1 (resident)
                pl.BlockSpec((Kp, TN), lambda j, i: (0, j)),   # W2 column tile (outer-axis only)
                pl.BlockSpec((1, TN), lambda j, i: (0, j)),    # b2 column tile
            ],
            out_specs=pl.BlockSpec((TB, TN), lambda j, i: (i, j)),
        ),
        compiler_params=pltpu.CompilerParams(
            # Every output block is written exactly once -> both axes independent;
            # megacore / v7x 2-TC sharding works even with a single batch block.
            dimension_semantics=("parallel", "parallel"),
            vmem_limit_bytes=vmem_limit,
        ),
        cost_estimate=cost,
    )(x_p, params["w1_p"], params["b1_p"], params["w2_p"], params["b2_p"])

    # Strip padding, add the singleton seq axis (torch's unsqueeze(1)), split,
    # and apply sigmoid only to the (B,1,1) attn_gate slice.
    all_cond_signals = out[:B, :out_dim][:, None, :]
    attn_cond_states = all_cond_signals[..., 0:E]
    attn_gate        = jax.nn.sigmoid(all_cond_signals[..., E:E + 1])
    film1_gamma      = all_cond_signals[..., E + 1:2 * E + 1]
    film1_beta       = all_cond_signals[..., 2 * E + 1:3 * E + 1]
    film2_gamma      = all_cond_signals[..., 3 * E + 1:4 * E + 1]
    film2_beta       = all_cond_signals[..., 4 * E + 1:5 * E + 1]
    return attn_cond_states, attn_gate, film1_gamma, film1_beta, film2_gamma, film2_beta


def _reference_forward(condition_values, w_fc, b_fc, w_proj, b_proj, embed_dim):
    """Pure-JAX reference for correctness check."""
    h = condition_values @ w_fc + b_fc
    c = jnp.float32(0.7978845608028654)
    h = 0.5 * h * (1.0 + jnp.tanh(c * (h + 0.044715 * h ** 3)))
    y = h @ w_proj + b_proj
    y = y[:, None, :]
    E = embed_dim
    return (
        y[..., 0:E],
        jax.nn.sigmoid(y[..., E:E + 1]),
        y[..., E + 1:2 * E + 1],
        y[..., 2 * E + 1:3 * E + 1],
        y[..., 3 * E + 1:4 * E + 1],
        y[..., 4 * E + 1:5 * E + 1],
    )


if __name__ == "__main__":
    embed_dim = 32
    inner_dim = 2 * embed_dim
    out_dim = 5 * embed_dim + 1

    key = jax.random.PRNGKey(0)
    k0, k1, k2, k3, k4 = jax.random.split(key, 5)

    # Deterministic synthetic parameters (Conv1D: weight (nx, nf), bias broadcast row).
    w_fc = 0.02 * jax.random.normal(k1, (1, inner_dim), dtype=jnp.float32)
    b_fc = 0.01 * jax.random.normal(k2, (1, inner_dim), dtype=jnp.float32)
    w_proj = 0.02 * jax.random.normal(k3, (inner_dim, out_dim), dtype=jnp.float32)
    b_proj = 0.01 * jax.random.normal(k4, (1, out_dim), dtype=jnp.float32)

    # Weights are padded/cast ONCE (init-time), not per forward call.
    params_f32 = prepare_condition_processor_params(
        w_fc, b_fc, w_proj, b_proj, embed_dim, weight_dtype=jnp.float32)
    params_bf16 = prepare_condition_processor_params(
        w_fc, b_fc, w_proj, b_proj, embed_dim)                 # default bf16 W2

    # (batch, params, atol, rtol): exact f32 path, then the default bf16-W2 path with
    # a non-multiple-of-8 batch to exercise batch padding.
    checks = [
        (8, params_f32, 1e-5, 1e-5),
        (5, params_bf16, 2e-3, 2e-2),
    ]
    for batch, params, atol, rtol in checks:
        condition_values = jax.random.normal(k0, (batch, 1), dtype=jnp.float32)

        outs = condition_processor_forward(condition_values, params)
        outs = jax.block_until_ready(outs)

        refs = _reference_forward(condition_values, w_fc, b_fc, w_proj, b_proj, embed_dim)
        expected_shapes = [(batch, 1, embed_dim), (batch, 1, 1)] + [(batch, 1, embed_dim)] * 4
        for o, r, es in zip(outs, refs, expected_shapes):
            assert o.shape == es, (o.shape, es)
            assert jnp.allclose(o, r, atol=atol, rtol=rtol), (
                "max abs err", float(jnp.max(jnp.abs(o - r))), str(params["weight_dtype"]))

    print("KERNEL_OK")
</pallas_src>

<mosaic_0001>
module attributes {stable_mosaic.version = 11 : i64} {
  func.func @_cond_processor_kernel(%arg0: i32, %arg1: i32, %arg2: memref<8x1xf32, #tpu.memory_space<vmem>>, %arg3: memref<1x128xf32, #tpu.memory_space<vmem>>, %arg4: memref<1x128xf32, #tpu.memory_space<vmem>>, %arg5: memref<128x256xf32, #tpu.memory_space<vmem>>, %arg6: memref<1x256xf32, #tpu.memory_space<vmem>>, %arg7: memref<8x256xf32, #tpu.memory_space<vmem>>) attributes {dimension_semantics = [#tpu.dimension_semantics<parallel>, #tpu.dimension_semantics<parallel>], iteration_bounds = array<i64: 1, 1>, scalar_prefetch = 0 : i64, scratch_operands = 0 : i64, tpu.core_type = #tpu.core_type<tc>, window_params = [{transform_indices = @transform_0, window_bounds = array<i64: 8, 1>}, {pipeline_mode = #tpu.pipeline_mode<synchronous>, transform_indices = @transform_1, window_bounds = array<i64: 1, 128>}, {pipeline_mode = #tpu.pipeline_mode<synchronous>, transform_indices = @transform_2, window_bounds = array<i64: 1, 128>}, {transform_indices = @transform_3, window_bounds = array<i64: 128, 256>}, {transform_indices = @transform_4, window_bounds = array<i64: 1, 256>}, {transform_indices = @transform_5, window_bounds = array<i64: 8, 256>}]} {
    %c0 = arith.constant 0 : index
    %c0_0 = arith.constant 0 : index
    %0 = vector.load %arg2[%c0, %c0_0] : memref<8x1xf32, #tpu.memory_space<vmem>>, vector<8x1xf32>
    %c0_1 = arith.constant 0 : index
    %c0_2 = arith.constant 0 : index
    %1 = vector.load %arg3[%c0_1, %c0_2] : memref<1x128xf32, #tpu.memory_space<vmem>>, vector<1x128xf32>
    %2 = vector.broadcast %0 : vector<8x1xf32> to vector<8x128xf32>
    %3 = vector.broadcast %1 : vector<1x128xf32> to vector<8x128xf32>
    %4 = arith.mulf %2, %3 : vector<8x128xf32>
    %c0_3 = arith.constant 0 : index
    %c0_4 = arith.constant 0 : index
    %5 = vector.load %arg4[%c0_3, %c0_4] : memref<1x128xf32, #tpu.memory_space<vmem>>, vector<1x128xf32>
    %6 = vector.broadcast %5 : vector<1x128xf32> to vector<8x128xf32>
    %7 = arith.addf %4, %6 : vector<8x128xf32>
    %cst = arith.constant 5.000000e-01 : f32
    %8 = vector.broadcast %cst : f32 to vector<8x128xf32>
    %9 = arith.mulf %8, %7 : vector<8x128xf32>
    %10 = arith.mulf %7, %7 : vector<8x128xf32>
    %11 = arith.mulf %10, %7 : vector<8x128xf32>
    %cst_5 = arith.constant 4.471500e-02 : f32
    %12 = vector.broadcast %cst_5 : f32 to vector<8x128xf32>
    %13 = arith.mulf %12, %11 : vector<8x128xf32>
    %14 = arith.addf %7, %13 : vector<8x128xf32>
    %cst_6 = arith.constant 0.797884583 : f32
    %15 = vector.broadcast %cst_6 : f32 to vector<8x128xf32>
    %16 = arith.mulf %15, %14 : vector<8x128xf32>
    %17 = math.tanh %16 : vector<8x128xf32>
    %cst_7 = arith.constant 1.000000e+00 : f32
    %18 = vector.broadcast %cst_7 : f32 to vector<8x128xf32>
    %19 = arith.addf %18, %17 : vector<8x128xf32>
    %20 = arith.mulf %9, %19 : vector<8x128xf32>
    %c0_8 = arith.constant 0 : index
    %c0_9 = arith.constant 0 : index
    %21 = vector.load %arg5[%c0_8, %c0_9] : memref<128x256xf32, #tpu.memory_space<vmem>>, vector<128x256xf32>
    %cst_10 = arith.constant dense<0.000000e+00> : vector<8x256xf32>
    %22 = tpu.matmul %20, %21, %cst_10 {dimension_numbers = #tpu.dot_dimension_numbers<[1], [0], [0], [1], [0, 0, 1, 1], [], []>} : vector<8x128xf32>, vector<128x256xf32>, vector<8x256xf32> -> vector<8x256xf32>
    %c0_11 = arith.constant 0 : index
    %c0_12 = arith.constant 0 : index
    %23 = vector.load %arg6[%c0_11, %c0_12] : memref<1x256xf32, #tpu.memory_space<vmem>>, vector<1x256xf32>
    %24 = vector.broadcast %23 : vector<1x256xf32> to vector<8x256xf32>
    %25 = arith.addf %22, %24 : vector<8x256xf32>
    %c0_13 = arith.constant 0 : index
    %c0_14 = arith.constant 0 : index
    %26 = vector.load %arg7[%c0_13, %c0_14] : memref<8x256xf32, #tpu.memory_space<vmem>>, vector<8x256xf32>
    tpu.vector_store %arg7[%c0_13, %c0_14], %25 {strides = array<i32>} : memref<8x256xf32, #tpu.memory_space<vmem>>, vector<8x256xf32>,
    return
  }
  func.func @transform_0(%arg0: i32, %arg1: i32) -> (i32, i32) {
    %c0_i32 = arith.constant 0 : i32
    %c0_i32_0 = arith.constant 0 : i32
    return %arg1, %c0_i32 : i32, i32
  }
  func.func @transform_1(%arg0: i32, %arg1: i32) -> (i32, i32) {
    %c0_i32 = arith.constant 0 : i32
    %c0_i32_0 = arith.constant 0 : i32
    %c0_i32_1 = arith.constant 0 : i32
    return %c0_i32, %c0_i32_0 : i32, i32
  }
  func.func @transform_2(%arg0: i32, %arg1: i32) -> (i32, i32) {
    %c0_i32 = arith.constant 0 : i32
    %c0_i32_0 = arith.constant 0 : i32
    %c0_i32_1 = arith.constant 0 : i32
    return %c0_i32, %c0_i32_0 : i32, i32
  }
  func.func @transform_3(%arg0: i32, %arg1: i32) -> (i32, i32) {
    %c0_i32 = arith.constant 0 : i32
    %c0_i32_0 = arith.constant 0 : i32
    return %c0_i32, %arg0 : i32, i32
  }
  func.func @transform_4(%arg0: i32, %arg1: i32) -> (i32, i32) {
    %c0_i32 = arith.constant 0 : i32
    %c0_i32_0 = arith.constant 0 : i32
    return %c0_i32, %arg0 : i32, i32
  }
  func.func @transform_5(%arg0: i32, %arg1: i32) -> (i32, i32) {
    %c0_i32 = arith.constant 0 : i32
    return %arg1, %arg0 : i32, i32
  }
}

</mosaic_0001>

<llo_original>
// kernel: tpu_custom_call.1
$region0: #{tpu_custom_call.1}
  #allocation0 [shape = 'u32[]', space=smem, size = 0x4, offset = 0x4, fixed_abs, tag = 'smem constant byte address 0x4 - core index']
  #allocation1 [shape = 'u32[144,128]{1,0:T(1,128)}', space=vmem, size = 0x12000, scoped, tag = 'internal scratch']
  %s0 = inlined_call_operand.vmem [shape: f32[8,1], index: 0, kind: input, shape index: {}]
  %s1 = inlined_call_operand.vmem [shape: f32[1,128], index: 1, kind: input, shape index: {}]
  %s2 = inlined_call_operand.vmem [shape: f32[1,128], index: 2, kind: input, shape index: {}]
  %s3 = inlined_call_operand.hbm [shape: f32[128,256], index: 3, kind: input, shape index: {}]
  %s4 = inlined_call_operand.vmem [shape: f32[1,256], index: 4, kind: input, shape index: {}]
  %s5 = inlined_call_operand.hbm [shape: f32[8,256], index: 5, kind: output, shape index: {}]
  %s6 = sld [smem:[#allocation0]]
  $region34: #{tpu_custom_call.1} parent=0
    _
  %s8 = ssub.s32 1, %s6
  %s9 = scalar_select 0, %s8, %s6
  $region1: #{tpu_custom_call.1} parent=0
    #allocation2 [shape = 'u8[131072]{0}', space=vmem, size = 0x20000, scoped, tag = 'input window, operand 3, single buffered']
    #allocation3 [shape = 's32[1]{0}', space=sflag, size = 0x4, scoped, tag = 'scoped memory for tpu_custom_call.1']
    #allocation4 [shape = 's32[1]{0}', space=sflag, size = 0x4, scoped, tag = 'scoped memory for tpu_custom_call.1']
    #allocation5 [shape = 'u8[8192]{0}', space=vmem, size = 0x2000, scoped, tag = 'output window, operand 0, single buffered']
    %10 = vsyncpa [#allocation3], 0
    %11 = vsyncpa [#allocation4], 0
    // Predicated region
    $region2: #{tpu_custom_call.1} parent=1 // pred_check
      _
    $region3: #{tpu_custom_call.1} parent=1 // pred_check_branch
      %13 = sbr.rel (0) target = $region5
    $region4: #{tpu_custom_call.1} parent=1 // pred_region
      _
    $region5: #{tpu_custom_call.1} parent=1 // pred_fallthru
      _
    // Predicated region
    $region6: #{tpu_custom_call.1} parent=1 // pred_check
      _
    $region7: #{tpu_custom_call.1} parent=1 // pred_check_branch
      %15 = sbr.rel (0) target = $region9
    $region8: #{tpu_custom_call.1} parent=1 // pred_region
      _
    $region9: #{tpu_custom_call.1} parent=1 // pred_fallthru
      _
    // Predicated region
    $region10: #{tpu_custom_call.1} parent=1 // pred_check
      _
    $region11: #{tpu_custom_call.1} parent=1 // pred_check_branch
      %17 = sbr.rel (0) target = $region13
    $region12: #{tpu_custom_call.1} parent=1 // pred_region
      _
    $region13: #{tpu_custom_call.1} parent=1 // pred_fallthru
      _
    // Predicated region
    $region14: #{tpu_custom_call.1} parent=1 // pred_check
      _
    $region15: #{tpu_custom_call.1} parent=1 // pred_check_branch
      %19 = sbr.rel (0) target = $region17
    $region16: #{tpu_custom_call.1} parent=1 // pred_region
      %s21 = ssub.s32 4096, 4096
      %22 = vsyncadd [#allocation3], %s21
      %s23 = sshll.u32 [#allocation2], 4
      %s24 = int_to_ptr.vmem [resolvable:$true] %s23
      %29 = dma.hbm_to_vmem [thread:$0]  %s3, 4096, %s24, [#allocation3], 256, 256, 16
    $region17: #{tpu_custom_call.1} parent=1 // pred_fallthru
      _
    // Predicated region
    $region18: #{tpu_custom_call.1} parent=1 // pred_check
      _
    $region19: #{tpu_custom_call.1} parent=1 // pred_check_branch
      %31 = sbr.rel (0) target = $region21
    $region20: #{tpu_custom_call.1} parent=1 // pred_region
      _
    $region21: #{tpu_custom_call.1} parent=1 // pred_fallthru
      _
    // Predicated region
    $region22: #{tpu_custom_call.1} parent=1 // pred_check
      _
    $region23: #{tpu_custom_call.1} parent=1 // pred_check_branch
      %33 = sbr.rel (0) target = $region25
    $region24: #{tpu_custom_call.1} parent=1 // pred_region
      %34 = dma.done [#allocation3], 4096
    $region25: #{tpu_custom_call.1} parent=1 // pred_fallthru
      _
    %v35 = vld [vmem:[%s0] sm:$0xff]
    %v36 = vld [vmem:[%s1] sm:$0x1]
    %38 = vset.pattern.permute.xlu0 0
    %39 = vperm.xlu0 %38, %v35
    %v40 = vpop.permute.xlu0 %39
    %v43 = vlaneseq
    %v44 = vshrl.u32 %v43, 7
    %v45 = vsub.s32 0, %v44
    %v46 = vrot.slane %v36, %v45
    %v48 = vmul.f32 %v40, %v46
    %v49 = vld [vmem:[%s2] sm:$0x1]
    %v51 = vlaneseq
    %v52 = vshrl.u32 %v51, 7
    %v53 = vsub.s32 0, %v52
    %v54 = vrot.slane %v49, %v53
    %v56 = vadd.f32 %v48, %v54
    %v57 = vmul.f32 %v56, 0.5
    %v58 = vmul.f32 %v56, %v56
    %v59 = vmul.f32 %v58, %v56
    %v60 = vmul.f32 %v59, 0.044715
    %v61 = vadd.f32 %v56, %v60
    %v62 = vmul.f32 %v61, 0.7978846
    %v63 = vtanh.pop %v62
    %v64 = vadd.f32 %v63, 1.0
    %v65 = vmul.f32 %v57, %v64
    %v66 = vld [vmem:[#allocation2] sm:$0xff]
    %v67 = vld [vmem:[#allocation2 + $0x8] sm:$0xff]
    %v68 = vld [vmem:[#allocation2 + $0x10] sm:$0xff]
    %v69 = vld [vmem:[#allocation2 + $0x18] sm:$0xff]
    %v70 = vld [vmem:[#allocation2 + $0x20] sm:$0xff]
    %v71 = vld [vmem:[#allocation2 + $0x28] sm:$0xff]
    %v72 = vld [vmem:[#allocation2 + $0x30] sm:$0xff]
    %v73 = vld [vmem:[#allocation2 + $0x38] sm:$0xff]
    %v74 = vld [vmem:[#allocation2 + $0x40] sm:$0xff]
    %v75 = vld [vmem:[#allocation2 + $0x48] sm:$0xff]
    %v76 = vld [vmem:[#allocation2 + $0x50] sm:$0xff]
    %v77 = vld [vmem:[#allocation2 + $0x58] sm:$0xff]
    %v78 = vld [vmem:[#allocation2 + $0x60] sm:$0xff]
    %v79 = vld [vmem:[#allocation2 + $0x68] sm:$0xff]
    %v80 = vld [vmem:[#allocation2 + $0x70] sm:$0xff]
    %v81 = vld [vmem:[#allocation2 + $0x78] sm:$0xff]
    %v82 = vld [vmem:[#allocation2 + $0x80] sm:$0xff]
    %v83 = vld [vmem:[#allocation2 + $0x88] sm:$0xff]
    %v84 = vld [vmem:[#allocation2 + $0x90] sm:$0xff]
    %v85 = vld [vmem:[#allocation2 + $0x98] sm:$0xff]
    %v86 = vld [vmem:[#allocation2 + $0xa0] sm:$0xff]
    %v87 = vld [vmem:[#allocation2 + $0xa8] sm:$0xff]
    %v88 = vld [vmem:[#allocation2 + $0xb0] sm:$0xff]
    %v89 = vld [vmem:[#allocation2 + $0xb8] sm:$0xff]
    %v90 = vld [vmem:[#allocation2 + $0xc0] sm:$0xff]
    %v91 = vld [vmem:[#allocation2 + $0xc8] sm:$0xff]
    %v92 = vld [vmem:[#allocation2 + $0xd0] sm:$0xff]
    %v93 = vld [vmem:[#allocation2 + $0xd8] sm:$0xff]
    %v94 = vld [vmem:[#allocation2 + $0xe0] sm:$0xff]
    %v95 = vld [vmem:[#allocation2 + $0xe8] sm:$0xff]
    %v96 = vld [vmem:[#allocation2 + $0xf0] sm:$0xff]
    %v97 = vld [vmem:[#allocation2 + $0xf8] sm:$0xff]
    %v98 = vld [vmem:[%s4] sm:$0x3]
    %v100 = vlaneseq
    %v101 = vshrl.u32 %v100, 7
    %v102 = vsub.s32 0, %v101
    %v103 = vrot.slane %v98, %v102
    %v104 = vlaneseq
    %v105 = vshrl.u32 %v104, 7
    %v106 = vsub.s32 1, %v105
    %v107 = vrot.slane %v98, %v106
    %110 = vmatprep.subr.mxu0 %v97
    %111 = vmatpush1.msra.mxu0 %v96
    %112 = vmatprep.subr.mxu0 %v95
    %113 = vmatpush1.msra.mxu0 %v94
    %114 = vmatprep.subr.mxu0 %v93
    %115 = vmatpush1.msra.mxu0 %v92
    %116 = vmatprep.subr.mxu0 %v91
    %117 = vmatpush1.msra.mxu0 %v90
    %118 = vmatprep.subr.mxu0 %v89
    %119 = vmatpush1.msra.mxu0 %v88
    %120 = vmatprep.subr.mxu0 %v87
    %121 = vmatpush1.msra.mxu0 %v86
    %122 = vmatprep.subr.mxu0 %v85
    %123 = vmatpush1.msra.mxu0 %v84
    %124 = vmatprep.subr.mxu0 %v83
    %125 = vmatpush1.msra.mxu0 %v82
    %126 = vmatprep.subr.mxu0 %v81
    %127 = vmatpush1.msra.mxu0 %v80
    %128 = vmatprep.subr.mxu0 %v79
    %129 = vmatpush1.msra.mxu0 %v78
    %130 = vmatprep.subr.mxu0 %v77
    %131 = vmatpush1.msra.mxu0 %v76
    %132 = vmatprep.subr.mxu0 %v75
    %133 = vmatpush1.msra.mxu0 %v74
    %134 = vmatprep.subr.mxu0 %v73
    %135 = vmatpush1.msra.mxu0 %v72
    %136 = vmatprep.subr.mxu0 %v71
    %137 = vmatpush1.msra.mxu0 %v70
    %138 = vmatprep.subr.mxu0 %v69
    %139 = vmatpush1.msra.mxu0 %v68
    %140 = vmatprep.subr.mxu0 %v67
    %141 = vmatpush1.msra.mxu0 %v66
    %142 = vmatprep.subr.mxu0 0.0
    %143 = vmatpush2.msra.mxu0 0.0
    %144 = vmatprep.subr.mxu0 0.0
    %145 = vmatpush2.msra.mxu0 0.0
    %146 = vmatprep.subr.mxu0 0.0
    %147 = vmatpush2.msra.mxu0 0.0
    %148 = vmatprep.subr.mxu0 0.0
    %149 = vmatpush2.msra.mxu0 0.0
    %150 = vmatprep.subr.mxu0 0.0
    %151 = vmatpush2.msra.mxu0 0.0
    %152 = vmatprep.subr.mxu0 0.0
    %153 = vmatpush2.msra.mxu0 0.0
    %154 = vmatprep.subr.mxu0 0.0
    %155 = vmatpush2.msra.mxu0 0.0
    %156 = vmatprep.subr.mxu0 0.0
    %157 = vmatpush2.msra.mxu0 0.0
    %158 = vmatprep.subr.mxu0 0.0
    %159 = vmatpush2.msra.mxu0 0.0
    %160 = vmatprep.subr.mxu0 0.0
    %161 = vmatpush2.msra.mxu0 0.0
    %162 = vmatprep.subr.mxu0 0.0
    %163 = vmatpush2.msra.mxu0 0.0
    %164 = vmatprep.subr.mxu0 0.0
    %165 = vmatpush2.msra.mxu0 0.0
    %166 = vmatprep.subr.mxu0 0.0
    %167 = vmatpush2.msra.mxu0 0.0
    %168 = vmatprep.subr.mxu0 0.0
    %169 = vmatpush2.msra.mxu0 0.0
    %170 = vmatprep.subr.mxu0 0.0
    %171 = vmatpush2.msra.mxu0 0.0
    %172 = vmatprep.subr.mxu0 0.0
    %173 = vmatpush2.msra.mxu0 0.0
    %174 = vmatprep.mubr.f32.mxu0 0.0
    %175 = vmatmul.mubr.f32.gmra.mxu0 %v65
    %v176 = vpop.f32.mrf.mxu0
    %v177 = vadd.f32 %v103, %v176
    %v178 = vpop.f32.mrf.mxu0
    %v179 = vadd.f32 %v107, %v178
    %180 = vdwg.mxu0
    %181 = vst [vmem:[#allocation5] sm:$0xff] %v177
    %182 = vst [vmem:[#allocation5 + $0x8] sm:$0xff] %v179
    // Predicated region
    $region26: #{tpu_custom_call.1} parent=1 // pred_check
      _
    $region27: #{tpu_custom_call.1} parent=1 // pred_check_branch
      %184 = sbr.rel (0) target = $region29
    $region28: #{tpu_custom_call.1} parent=1 // pred_region
      %s186 = ssub.s32 256, 256
      %187 = vsyncadd [#allocation4], %s186
      %s189 = sshll.u32 [#allocation5], 4
      %s190 = int_to_ptr.vmem [resolvable:$true] %s189
      %192 = dma.vmem_to_hbm [thread:$0]  %s190, 256, %s5, [#allocation4]
    $region29: #{tpu_custom_call.1} parent=1 // pred_fallthru
      _
    // Predicated region
    $region30: #{tpu_custom_call.1} parent=1 // pred_check
      _
    $region31: #{tpu_custom_call.1} parent=1 // pred_check_branch
      %194 = sbr.rel (0) target = $region33
    $region32: #{tpu_custom_call.1} parent=1 // pred_region
      %195 = dma.done [#allocation4], 256
    $region33: #{tpu_custom_call.1} parent=1 // pred_fallthru
      _
    %196 = vsyncpa [#allocation3], 1
    %197 = vsyncpa [#allocation4], 1

</llo_original>
